<compile_context>
chip_gen: v7x
topology: tpu7x:2x2x1
jax: 0.10.0
libtpu: 0.0.40
codegen_flags: <defaults>
</compile_context>

<pallas_src>
import functools
import math

import jax
import jax.numpy as jnp
from jax.experimental import pallas as pl
from jax.experimental.pallas import tpu as pltpu


# ----------------------------------------------------------------------------
# Shared tiling helper
# ----------------------------------------------------------------------------
def _choose_l_tiling(L, max_tile):
    """Pick an L tile satisfying the (8,128) rule and a padded length."""
    if L <= max_tile:
        return L, L                       # full-dim block: exempt from 128 rule
    t = (max_tile // 128) * 128
    while t >= 128:
        if L % t == 0:
            return t, L                   # clean multiple-of-128 divisor
        t -= 128
    tile = (max_tile // 128) * 128        # no divisor: pad L up to tile multiple
    l_pad = pl.cdiv(L, tile) * tile
    return tile, l_pad


# ----------------------------------------------------------------------------
# Kernel 1: SpatialKeyValue.forward (fused key+value 1x1 conv)
# ----------------------------------------------------------------------------
def _kv_kernel(w_ref, b_ref, x_ref, k_ref, v_ref, *, att_dim):
    # w_ref: (att_dim + out_dim, C_in)   -- resident
    # b_ref: (att_dim + out_dim, 1)      -- resident, f32
    # x_ref: (C_in, TILE_L)              -- one (batch, L-tile) slab (NCL layout)
    out = jnp.dot(w_ref[...], x_ref[...], preferred_element_type=jnp.float32)
    out = out + b_ref[...]
    k_ref[...] = out[:att_dim, :].astype(k_ref.dtype)
    v_ref[...] = out[att_dim:, :].astype(v_ref.dtype)


def spatial_key_value(x, wk, bk, wv, bv, *, max_tile_l=512):
    """Equivalent of SpatialKeyValue.forward.

    x: (N, C_in, L) in PyTorch Conv1d NCL layout (no transpose is performed).
    Returns (key, value) of shapes (N, att_dim, L), (N, out_dim, L).
    """
    N, C_in, L = x.shape
    att_dim = wk.shape[0]
    out_dim = wv.shape[0]
    out_total = att_dim + out_dim

    w = jnp.concatenate([wk, wv], axis=0).astype(x.dtype)
    b = jnp.concatenate([bk, bv], axis=0).reshape(out_total, 1).astype(jnp.float32)

    tile_l, l_pad = _choose_l_tiling(L, max_tile_l)
    if l_pad != L:
        x = jnp.pad(x, ((0, 0), (0, 0), (0, l_pad - L)))
    n_l_tiles = l_pad // tile_l

    itemsize = jnp.dtype(x.dtype).itemsize
    per_step = (out_total * C_in * itemsize
                + out_total * 4
                + C_in * tile_l * itemsize
                + out_total * tile_l * itemsize)
    vmem_limit = int(min(max(4 * per_step, 8 << 20), 32 << 20))

    kernel = functools.partial(_kv_kernel, att_dim=att_dim)

    key_p, val_p = pl.pallas_call(
        kernel,
        out_shape=(
            jax.ShapeDtypeStruct((N, att_dim, l_pad), x.dtype),
            jax.ShapeDtypeStruct((N, out_dim, l_pad), x.dtype),
        ),
        grid=(N, n_l_tiles),
        in_specs=[
            pl.BlockSpec((out_total, C_in), lambda n, l: (0, 0)),
            pl.BlockSpec((out_total, 1), lambda n, l: (0, 0)),
            pl.BlockSpec((None, C_in, tile_l), lambda n, l: (n, 0, l)),
        ],
        out_specs=(
            pl.BlockSpec((None, att_dim, tile_l), lambda n, l: (n, 0, l)),
            pl.BlockSpec((None, out_dim, tile_l), lambda n, l: (n, 0, l)),
        ),
        compiler_params=pltpu.CompilerParams(
            dimension_semantics=("parallel", "parallel"),
            vmem_limit_bytes=vmem_limit,
        ),
    )(w, b, x)

    if l_pad != L:
        key_p = key_p[:, :, :L]
        val_p = val_p[:, :, :L]
    return key_p, val_p


# ----------------------------------------------------------------------------
# Kernel 2: Network.cross_attention, fully fused
# ----------------------------------------------------------------------------
def _cross_attn_kernel(w0_ref, b0_ref, w1_ref, b1_ref, pix_ref, hold_ref,
                       out_ref, *, att_dim, n_views, n_holder):
    # w0/b0 : fused (scaled-key | value) weights for pixel_feat   -- resident
    # w1/b1 : fused (key | value) weights for holder              -- resident
    # pix_ref : (V, C, TILE_L)   hold_ref : (H, C, TILE_L)
    # out_ref : (H, out_dim, TILE_L)
    w0 = w0_ref[...]
    b0 = b0_ref[...]
    w1 = w1_ref[...]
    b1 = b1_ref[...]

    # Pixel-feature projections (keys already carry the 1/sqrt(d) scale).
    k_pix, v_pix = [], []
    for v in range(n_views):
        p = jnp.dot(w0, pix_ref[v], preferred_element_type=jnp.float32) + b0
        k_pix.append(p[:att_dim, :])
        v_pix.append(p[att_dim:, :])

    # Holder projections (query keys / query values).
    q_k, q_v = [], []
    for h in range(n_holder):
        p = jnp.dot(w1, hold_ref[h], preferred_element_type=jnp.float32) + b1
        q_k.append(p[:att_dim, :])
        q_v.append(p[att_dim:, :])

    # Attention over views, independently per (holder, point-lane).
    for h in range(n_holder):
        scores = [jnp.sum(k_pix[v] * q_k[h], axis=0, keepdims=True)
                  for v in range(n_views)]                       # each (1, TILE_L)
        m = scores[0]
        for v in range(1, n_views):
            m = jnp.maximum(m, scores[v])
        exps = [jnp.exp(s - m) for s in scores]
        denom = exps[0]
        for v in range(1, n_views):
            denom = denom + exps[v]
        inv = 1.0 / denom
        acc = q_v[h]                                              # residual
        for v in range(n_views):
            acc = acc + (exps[v] * inv) * v_pix[v]
        out_ref[h] = acc.astype(out_ref.dtype)


def cross_attention(holder, pixel_feat,
                    wk0, bk0, wv0, bv0,
                    wk1, bk1, wv1, bv1, *, max_tile_l=256):
    """Fused equivalent of Network.cross_attention(holder, pixel_feat).

    holder:     (n_holder, C, L)   -- same layout as the PyTorch call site
    pixel_feat: (n_views,  C, L)
    Returns final_holder of shape (n_holder, out_dim, L).
    """
    V, C, L = pixel_feat.shape
    H, C2, L2 = holder.shape
    assert C == C2 and L == L2
    att_dim = wk0.shape[0]
    out_dim = wv0.shape[0]
    out_total = att_dim + out_dim
    assert wk1.shape[0] == att_dim and wv1.shape[0] == out_dim

    # Fold the 1/sqrt(att_dim) attention scale into the pixel key projection
    # (A is linear in key_embed, bias included) -> zero in-kernel cost.
    scale = 1.0 / math.sqrt(att_dim)
    w0 = jnp.concatenate([wk0 * scale, wv0], axis=0).astype(pixel_feat.dtype)
    b0 = jnp.concatenate([bk0 * scale, bv0], axis=0).reshape(out_total, 1).astype(jnp.float32)
    w1 = jnp.concatenate([wk1, wv1], axis=0).astype(holder.dtype)
    b1 = jnp.concatenate([bk1, bv1], axis=0).reshape(out_total, 1).astype(jnp.float32)

    tile_l, l_pad = _choose_l_tiling(L, max_tile_l)
    if l_pad != L:
        pad = l_pad - L
        pixel_feat = jnp.pad(pixel_feat, ((0, 0), (0, 0), (0, pad)))
        holder = jnp.pad(holder, ((0, 0), (0, 0), (0, pad)))
    n_l_tiles = l_pad // tile_l

    itemsize = jnp.dtype(pixel_feat.dtype).itemsize
    resident = 2 * (out_total * C * itemsize + out_total * 4)
    io_per_step = ((V + H) * C * tile_l + H * out_dim * tile_l) * itemsize
    interm = (V + H) * out_total * tile_l * 4 + (V * H + 8) * tile_l * 4
    vmem_limit = int(min(max(resident + 3 * io_per_step + 2 * interm, 16 << 20),
                         48 << 20))

    kernel = functools.partial(_cross_attn_kernel, att_dim=att_dim,
                               n_views=V, n_holder=H)

    out = pl.pallas_call(
        kernel,
        out_shape=jax.ShapeDtypeStruct((H, out_dim, l_pad), holder.dtype),
        grid=(n_l_tiles,),
        in_specs=[
            pl.BlockSpec((out_total, C), lambda l: (0, 0)),   # w0 (resident)
            pl.BlockSpec((out_total, 1), lambda l: (0, 0)),   # b0
            pl.BlockSpec((out_total, C), lambda l: (0, 0)),   # w1
            pl.BlockSpec((out_total, 1), lambda l: (0, 0)),   # b1
            pl.BlockSpec((V, C, tile_l), lambda l: (0, 0, l)),
            pl.BlockSpec((H, C, tile_l), lambda l: (0, 0, l)),
        ],
        out_specs=pl.BlockSpec((H, out_dim, tile_l), lambda l: (0, 0, l)),
        compiler_params=pltpu.CompilerParams(
            dimension_semantics=("parallel",),
            vmem_limit_bytes=vmem_limit,
        ),
    )(w0, b0, w1, b1, pixel_feat, holder)

    if l_pad != L:
        out = out[:, :, :L]
    return out


# ----------------------------------------------------------------------------
# Pure-JAX references (mirror the PyTorch code exactly)
# ----------------------------------------------------------------------------
def _init_conv1x1(key, out_dim, in_dim, dtype=jnp.float32):
    # Stand-in for PyTorch Conv1d default init: U(-1/sqrt(fan_in), 1/sqrt(fan_in)).
    kw, kb = jax.random.split(key)
    bound = 1.0 / jnp.sqrt(jnp.asarray(in_dim, dtype))
    w = jax.random.uniform(kw, (out_dim, in_dim), dtype, -bound, bound)
    b = jax.random.uniform(kb, (out_dim,), dtype, -bound, bound)
    return w, b


def _skv_ref(x, wk, bk, wv, bv):
    hp = jax.lax.Precision.HIGHEST
    k = jnp.einsum("oc,ncl->nol", wk, x, precision=hp) + bk[None, :, None]
    v = jnp.einsum("oc,ncl->nol", wv, x, precision=hp) + bv[None, :, None]
    return k, v


def _cross_attention_ref(holder, pixel_feat, wk0, bk0, wv0, bv0,
                         wk1, bk1, wv1, bv1):
    hp = jax.lax.Precision.HIGHEST
    att_dim = wk0.shape[0]
    pix_p = jnp.transpose(pixel_feat, (2, 1, 0))            # (L, C, V)
    hold_p = jnp.transpose(holder, (2, 1, 0))                # (L, C, H)
    key_embed, value_embed = _skv_ref(pix_p, wk0, bk0, wv0, bv0)
    query_key, query_value = _skv_ref(hold_p, wk1, bk1, wv1, bv1)
    A = jnp.einsum("ldv,ldh->lvh", key_embed, query_key, precision=hp)
    A = jax.nn.softmax(A / math.sqrt(att_dim), axis=1)       # softmax over views
    out = jnp.einsum("lcv,lvh->lch", value_embed, A, precision=hp)
    return jnp.transpose(query_value, (2, 1, 0)) + jnp.transpose(out, (2, 1, 0))


# ----------------------------------------------------------------------------
# Smoke tests
# ----------------------------------------------------------------------------
if __name__ == "__main__":
    input_dim, att_dim, out_dim = 256, 128, 256

    root = jax.random.PRNGKey(0)
    keys = jax.random.split(root, 9)

    # Shared SpatialKeyValue parameters.
    wk0, bk0 = _init_conv1x1(keys[0], att_dim, input_dim)
    wv0, bv0 = _init_conv1x1(keys[1], out_dim, input_dim)
    wk1, bk1 = _init_conv1x1(keys[2], att_dim, input_dim)
    wv1, bv1 = _init_conv1x1(keys[3], out_dim, input_dim)

    # --- Test 1: standalone SpatialKeyValue (clean L, multi-tile grid) ------
    x = jax.random.normal(keys[4], (2, input_dim, 256), jnp.float32)
    k_out, v_out = jax.jit(spatial_key_value)(x, wk0, bk0, wv0, bv0)
    jax.block_until_ready((k_out, v_out))
    k_ref, v_ref = _skv_ref(x, wk0, bk0, wv0, bv0)
    assert k_out.shape == (2, att_dim, 256) and v_out.shape == (2, out_dim, 256)
    assert jnp.allclose(k_out, k_ref, atol=1e-4, rtol=1e-4)
    assert jnp.allclose(v_out, v_ref, atol=1e-4, rtol=1e-4)

    # --- Test 2: standalone SpatialKeyValue (ragged L, pad-and-slice path) --
    x2 = jax.random.normal(keys[5], (3, input_dim, 200), jnp.float32)
    k2, v2 = jax.jit(functools.partial(spatial_key_value, max_tile_l=128))(
        x2, wk0, bk0, wv0, bv0)
    jax.block_until_ready((k2, v2))
    k2_ref, v2_ref = _skv_ref(x2, wk0, bk0, wv0, bv0)
    assert jnp.allclose(k2, k2_ref, atol=1e-4, rtol=1e-4)
    assert jnp.allclose(v2, v2_ref, atol=1e-4, rtol=1e-4)

    # --- Test 3: fused cross_attention (3 views, 4 holders, 512 points) -----
    V, H, L = 3, 4, 512
    pixel_feat = jax.random.normal(keys[6], (V, input_dim, L), jnp.float32)
    holder = jax.random.normal(keys[7], (H, input_dim, L), jnp.float32)

    fused = jax.jit(cross_attention)
    out = fused(holder, pixel_feat, wk0, bk0, wv0, bv0, wk1, bk1, wv1, bv1)
    jax.block_until_ready(out)
    ref = _cross_attention_ref(holder, pixel_feat, wk0, bk0, wv0, bv0,
                               wk1, bk1, wv1, bv1)
    assert out.shape == (H, out_dim, L)
    assert jnp.allclose(out, ref, atol=2e-3, rtol=2e-3)

    # --- Test 4: fused cross_attention, ragged point count + forced tiling --
    L2 = 200
    pixel_feat2 = jax.random.normal(keys[8], (V, input_dim, L2), jnp.float32)
    holder2 = holder[:, :, :L2]
    out2 = jax.jit(functools.partial(cross_attention, max_tile_l=128))(
        holder2, pixel_feat2, wk0, bk0, wv0, bv0, wk1, bk1, wv1, bv1)
    jax.block_until_ready(out2)
    ref2 = _cross_attention_ref(holder2, pixel_feat2, wk0, bk0, wv0, bv0,
                                wk1, bk1, wv1, bv1)
    assert out2.shape == (H, out_dim, L2)
    assert jnp.allclose(out2, ref2, atol=2e-3, rtol=2e-3)

    print("KERNEL_OK")
</pallas_src>

<mosaic_0001>
module attributes {stable_mosaic.version = 11 : i64} {
  func.func @_kv_kernel(%arg0: i32, %arg1: i32, %arg2: memref<384x256xf32, #tpu.memory_space<vmem>>, %arg3: memref<384x1xf32, #tpu.memory_space<vmem>>, %arg4: memref<1x256x256xf32, #tpu.memory_space<vmem>>, %arg5: memref<1x128x256xf32, #tpu.memory_space<vmem>>, %arg6: memref<1x256x256xf32, #tpu.memory_space<vmem>>) attributes {dimension_semantics = [#tpu.dimension_semantics<parallel>, #tpu.dimension_semantics<parallel>], iteration_bounds = array<i64: 2, 1>, scalar_prefetch = 0 : i64, scratch_operands = 0 : i64, tpu.core_type = #tpu.core_type<tc>, window_params = [{pipeline_mode = #tpu.pipeline_mode<synchronous>, transform_indices = @transform_0, window_bounds = array<i64: 384, 256>}, {pipeline_mode = #tpu.pipeline_mode<synchronous>, transform_indices = @transform_1, window_bounds = array<i64: 384, 1>}, {transform_indices = @transform_2, window_bounds = array<i64: 1, 256, 256>}, {transform_indices = @transform_3, window_bounds = array<i64: 1, 128, 256>}, {transform_indices = @transform_4, window_bounds = array<i64: 1, 256, 256>}]} {
    %c0 = arith.constant 0 : index
    %c0_0 = arith.constant 0 : index
    %0 = vector.load %arg2[%c0, %c0_0] : memref<384x256xf32, #tpu.memory_space<vmem>>, vector<384x256xf32>
    %c0_1 = arith.constant 0 : index
    %c0_2 = arith.constant 0 : index
    %c0_3 = arith.constant 0 : index
    %1 = vector.load %arg4[%c0_1, %c0_2, %c0_3] : memref<1x256x256xf32, #tpu.memory_space<vmem>>, vector<1x256x256xf32>
    %2 = vector.shape_cast %1 : vector<1x256x256xf32> to vector<256x256xf32>
    %cst = arith.constant dense<0.000000e+00> : vector<384x256xf32>
    %3 = tpu.matmul %0, %2, %cst {dimension_numbers = #tpu.dot_dimension_numbers<[1], [0], [0], [1], [0, 0, 1, 1], [], []>} : vector<384x256xf32>, vector<256x256xf32>, vector<384x256xf32> -> vector<384x256xf32>
    %c0_4 = arith.constant 0 : index
    %c0_5 = arith.constant 0 : index
    %4 = vector.load %arg3[%c0_4, %c0_5] : memref<384x1xf32, #tpu.memory_space<vmem>>, vector<384x1xf32>
    %5 = vector.broadcast %4 : vector<384x1xf32> to vector<384x256xf32>
    %6 = arith.addf %3, %5 : vector<384x256xf32>
    %7 = vector.extract_strided_slice %6 {offsets = [0, 0], sizes = [128, 256], strides = [1, 1]} : vector<384x256xf32> to vector<128x256xf32>
    %c0_6 = arith.constant 0 : index
    %c0_7 = arith.constant 0 : index
    %c0_8 = arith.constant 0 : index
    %8 = vector.load %arg5[%c0_6, %c0_7, %c0_8] : memref<1x128x256xf32, #tpu.memory_space<vmem>>, vector<1x128x256xf32>
    %9 = vector.shape_cast %8 : vector<1x128x256xf32> to vector<128x256xf32>
    %10 = vector.shape_cast %7 : vector<128x256xf32> to vector<1x128x256xf32>
    tpu.vector_store %arg5[%c0_6, %c0_7, %c0_8], %10 {strides = array<i32>} : memref<1x128x256xf32, #tpu.memory_space<vmem>>, vector<1x128x256xf32>,
    %11 = vector.extract_strided_slice %6 {offsets = [128, 0], sizes = [256, 256], strides = [1, 1]} : vector<384x256xf32> to vector<256x256xf32>
    %c0_9 = arith.constant 0 : index
    %c0_10 = arith.constant 0 : index
    %c0_11 = arith.constant 0 : index
    %12 = vector.load %arg6[%c0_9, %c0_10, %c0_11] : memref<1x256x256xf32, #tpu.memory_space<vmem>>, vector<1x256x256xf32>
    %13 = vector.shape_cast %12 : vector<1x256x256xf32> to vector<256x256xf32>
    %14 = vector.shape_cast %11 : vector<256x256xf32> to vector<1x256x256xf32>
    tpu.vector_store %arg6[%c0_9, %c0_10, %c0_11], %14 {strides = array<i32>} : memref<1x256x256xf32, #tpu.memory_space<vmem>>, vector<1x256x256xf32>,
    return
  }
  func.func @transform_0(%arg0: i32, %arg1: i32) -> (i32, i32) {
    %c0_i32 = arith.constant 0 : i32
    %c0_i32_0 = arith.constant 0 : i32
    %c0_i32_1 = arith.constant 0 : i32
    return %c0_i32, %c0_i32_0 : i32, i32
  }
  func.func @transform_1(%arg0: i32, %arg1: i32) -> (i32, i32) {
    %c0_i32 = arith.constant 0 : i32
    %c0_i32_0 = arith.constant 0 : i32
    %c0_i32_1 = arith.constant 0 : i32
    return %c0_i32, %c0_i32_0 : i32, i32
  }
  func.func @transform_2(%arg0: i32, %arg1: i32) -> (i32, i32, i32) {
    %c0_i32 = arith.constant 0 : i32
    %c0_i32_0 = arith.constant 0 : i32
    return %arg0, %c0_i32, %arg1 : i32, i32, i32
  }
  func.func @transform_3(%arg0: i32, %arg1: i32) -> (i32, i32, i32) {
    %c0_i32 = arith.constant 0 : i32
    %c0_i32_0 = arith.constant 0 : i32
    return %arg0, %c0_i32, %arg1 : i32, i32, i32
  }
  func.func @transform_4(%arg0: i32, %arg1: i32) -> (i32, i32, i32) {
    %c0_i32 = arith.constant 0 : i32
    %c0_i32_0 = arith.constant 0 : i32
    return %arg0, %c0_i32, %arg1 : i32, i32, i32
  }
}

</mosaic_0001>

<llo_original>
// kernel: spatial_key_value.1
$region0: #{spatial_key_value.1}
  #allocation0 [shape = 'u32[]', space=smem, size = 0x4, offset = 0x4, fixed_abs, tag = 'smem constant byte address 0x4 - core index']
  #allocation1 [shape = 'u32[144,128]{1,0:T(1,128)}', space=vmem, size = 0x12000, scoped, tag = 'internal scratch']
  %s0 = inlined_call_operand.vmem [shape: f32[384,256], index: 0, kind: input, shape index: {}]
  %s1 = inlined_call_operand.vmem [shape: f32[384,1], index: 1, kind: input, shape index: {}]
  %s2 = inlined_call_operand.vmem [shape: f32[2,256,256], index: 2, kind: input, shape index: {}]
  %s3 = inlined_call_operand.hbm [shape: f32[2,128,256], index: 3, kind: output, shape index: {0}]
  %s4 = inlined_call_operand.hbm [shape: f32[2,256,256], index: 4, kind: output, shape index: {1}]
  %5 = xla_tuple %s3, %s4
  %s6 = sld [smem:[#allocation0]]
  $region53: #{spatial_key_value.1} parent=0
    _
  %s8 = ssub.s32 1, %s6
  %s9 = scalar_select 0, %s8, %s6
  $region1: #{spatial_key_value.1} parent=0
    #allocation2 [shape = 'u8[262144]{0}', space=vmem, size = 0x40000, scoped, tag = 'output window, operand 0']
    #allocation3 [shape = 's32[2]{0}', space=sflag, size = 0x8, scoped, tag = 'scoped memory for spatial_key_value.1']
    #allocation4 [shape = 'u8[524288]{0}', space=vmem, size = 0x80000, scoped, tag = 'output window, operand 1']
    #allocation5 [shape = 's32[2]{0}', space=sflag, size = 0x8, scoped, tag = 'scoped memory for spatial_key_value.1']
    %10 = vsyncpa [#allocation3], 0
    %s11 = scalar_lea.sflag [#allocation3], 1
    %12 = vsyncpa %s11, 0
    %13 = vsyncpa [#allocation5], 0
    %s14 = scalar_lea.sflag [#allocation5], 1
    %15 = vsyncpa %s14, 0
    loop: start=0, step=1, limit=4
    $region2: #{spatial_key_value.1} parent=1 // loop_pre_header
      _
    $region3: #{spatial_key_value.1} parent=1 // loop_header
      %s17 = sphi 0, %s21
      %p18 = scmp.ge.s32.totalorder %s17, 4
      %s24 = sphi 0, %s36
      %s25 = sphi 0, %s32
      %s26 = sphi 0, %s24
      %s27 = sphi 0, %s25
      %s28 = sphi 0, %s26
      %s29 = sphi 0, %s27
      %s37 = sphi 0, %s37
      %s39 = sphi 0, %s37
      %s40 = sphi 0, %s39
      %s54 = sphi 0, %s40
      %s58 = sphi 0, %s58
      %s60 = sphi 0, %s58
      %s61 = sphi 0, %s60
      %s75 = sphi 0, %s61
      %s83 = sphi 0, %s85
      %s86 = sphi 0, %s83
      %s87 = sphi 0, %s86
      %s103 = sphi 0, %s87
      %s111 = sphi 0, %s113
      %s114 = sphi 0, %s111
      %s115 = sphi 0, %s114
      %s131 = sphi 0, %s115
      %s139 = sphi 0, %s141
      %s142 = sphi 0, %s139
      %s143 = sphi 0, %s142
      %s159 = sphi 0, %s143
    $region4: #{spatial_key_value.1} parent=1 // loop_header_branch
      %20 = sbr.rel (%p18) target = $region8
    $region5: #{spatial_key_value.1} parent=1 // loop_body
      %s22 = ssub.s32 %s17, 1
      %s23 = ssub.s32 %s17, 2
      %s30 = sadd.s32 1, %s25
      %p31 = scmp.ge.s32.totalorder %s30, 1
      %s32 = scalar_select %p31, 0, %s30
      %s33 = sadd.s32 1, %s24
      %s34 = scalar_select %p31, %s33, %s24
      %p35 = scmp.ge.s32.totalorder %s34, 2
      %s36 = scalar_select %p35, 0, %s34
      %s38 = sadd.s32 %s37, 1
      %p41 = scmp.eq.s32.totalorder %s17, 1
      %p42 = scmp.ne.s32.totalorder %s37, %s39
      %p43 = scmp.eq.s32.totalorder %s17, 0
      %p44 = por %p42, %p43
      %p45 = scmp.ne.s32.totalorder %s37, %s39
      %p46 = scmp.eq.s32.totalorder %s22, 1
      %p47 = por %p45, %p46
      %p48 = scmp.ne.s32.totalorder %s39, %s40
      %p49 = scmp.eq.s32.totalorder %s22, 0
      %p50 = por %p48, %p49
      %p51 = scmp.ne.s32.totalorder %s39, %s40
      %p52 = scmp.eq.s32.totalorder %s23, 1
      %p53 = por %p51, %p52
      %p55 = scmp.ne.s32.totalorder %s40, %s54
      %p56 = scmp.eq.s32.totalorder %s23, 0
      %p57 = por %p55, %p56
      %s59 = sadd.s32 %s58, 1
      %p62 = scmp.eq.s32.totalorder %s17, 1
      %p63 = scmp.ne.s32.totalorder %s58, %s60
      %p64 = scmp.eq.s32.totalorder %s17, 0
      %p65 = por %p63, %p64
      %p66 = scmp.ne.s32.totalorder %s58, %s60
      %p67 = scmp.eq.s32.totalorder %s22, 1
      %p68 = por %p66, %p67
      %p69 = scmp.ne.s32.totalorder %s60, %s61
      %p70 = scmp.eq.s32.totalorder %s22, 0
      %p71 = por %p69, %p70
      %p72 = scmp.ne.s32.totalorder %s60, %s61
      %p73 = scmp.eq.s32.totalorder %s23, 1
      %p74 = por %p72, %p73
      %p76 = scmp.ne.s32.totalorder %s61, %s75
      %p77 = scmp.eq.s32.totalorder %s23, 0
      %p78 = por %p76, %p77
      %s79 = ssub.s32 %s24, %s36
      %s80 = ssub.s32 %s25, %s32
      %s81 = sor.u32 %s79, %s80
      %p82 = scmp.eq.s32.totalorder %s81, 0
      %s84 = sadd.s32 %s83, 1
      %s85 = scalar_select %p82, %s83, %s84
      %p88 = pneg %p82
      %p89 = scmp.eq.s32.totalorder %s17, 1
      %p90 = por %p88, %p89
      %p91 = scmp.ne.s32.totalorder %s83, %s86
      %p92 = scmp.eq.s32.totalorder %s17, 0
      %p93 = por %p91, %p92
      %p94 = scmp.ne.s32.totalorder %s83, %s86
      %p95 = scmp.eq.s32.totalorder %s22, 1
      %p96 = por %p94, %p95
      %p97 = scmp.ne.s32.totalorder %s86, %s87
      %p98 = scmp.eq.s32.totalorder %s22, 0
      %p99 = por %p97, %p98
      %p100 = scmp.ne.s32.totalorder %s86, %s87
      %p101 = scmp.eq.s32.totalorder %s23, 1
      %p102 = por %p100, %p101
      %p104 = scmp.ne.s32.totalorder %s87, %s103
      %p105 = scmp.eq.s32.totalorder %s23, 0
      %p106 = por %p104, %p105
      %s107 = ssub.s32 %s24, %s36
      %s108 = ssub.s32 %s25, %s32
      %s109 = sor.u32 %s107, %s108
      %p110 = scmp.eq.s32.totalorder %s109, 0
      %s112 = sadd.s32 %s111, 1
      %s113 = scalar_select %p110, %s111, %s112
      %p116 = pneg %p110
      %p117 = scmp.eq.s32.totalorder %s17, 1
      %p118 = por %p116, %p117
      %p119 = scmp.ne.s32.totalorder %s111, %s114
      %p120 = scmp.eq.s32.totalorder %s17, 0
      %p121 = por %p119, %p120
      %p122 = scmp.ne.s32.totalorder %s111, %s114
      %p123 = scmp.eq.s32.totalorder %s22, 1
      %p124 = por %p122, %p123
      %p125 = scmp.ne.s32.totalorder %s114, %s115
      %p126 = scmp.eq.s32.totalorder %s22, 0
      %p127 = por %p125, %p126
      %p128 = scmp.ne.s32.totalorder %s114, %s115
      %p129 = scmp.eq.s32.totalorder %s23, 1
      %p130 = por %p128, %p129
      %p132 = scmp.ne.s32.totalorder %s115, %s131
      %p133 = scmp.eq.s32.totalorder %s23, 0
      %p134 = por %p132, %p133
      %s135 = ssub.s32 %s24, %s36
      %s136 = ssub.s32 %s25, %s32
      %s137 = sor.u32 %s135, %s136
      %p138 = scmp.eq.s32.totalorder %s137, 0
      %s140 = sadd.s32 %s139, 1
      %s141 = scalar_select %p138, %s139, %s140
      %p144 = pneg %p138
      %p145 = scmp.eq.s32.totalorder %s17, 1
      %p146 = por %p144, %p145
      %p147 = scmp.ne.s32.totalorder %s139, %s142
      %p148 = scmp.eq.s32.totalorder %s17, 0
      %p149 = por %p147, %p148
      %p150 = scmp.ne.s32.totalorder %s139, %s142
      %p151 = scmp.eq.s32.totalorder %s22, 1
      %p152 = por %p150, %p151
      %p153 = scmp.ne.s32.totalorder %s142, %s143
      %p154 = scmp.eq.s32.totalorder %s22, 0
      %p155 = por %p153, %p154
      %p156 = scmp.ne.s32.totalorder %s142, %s143
      %p157 = scmp.eq.s32.totalorder %s23, 1
      %p158 = por %p156, %p157
      %p160 = scmp.ne.s32.totalorder %s143, %s159
      %p161 = scmp.eq.s32.totalorder %s23, 0
      %p162 = por %p160, %p161
      %p163 = scmp.le.s32.totalorder 1, %s17
      %p164 = scmp.lt.s32.totalorder %s17, 3
      %p165 = pnand %p163, %p164
      %p166 = pneg %p165
      // Predicated region
      $region9: #{spatial_key_value.1} parent=5 // pred_check
        _
      $region10: #{spatial_key_value.1} parent=5 // pred_check_branch
        %168 = sbr.rel (%p165) target = $region12
      $region11: #{spatial_key_value.1} parent=5 // pred_region
        %s169 = ssub.s32 %s17, 1
        // Predicated region
        $region13: #{spatial_key_value.1} parent=11 // pred_check
          %p170 = pneg %p50
        $region14: #{spatial_key_value.1} parent=11 // pred_check_branch
          %172 = sbr.rel (%p170) target = $region16
        $region15: #{spatial_key_value.1} parent=11 // pred_region
          _
        $region16: #{spatial_key_value.1} parent=11 // pred_fallthru
          _
        // Predicated region
        $region17: #{spatial_key_value.1} parent=11 // pred_check
          %p173 = pneg %p71
        $region18: #{spatial_key_value.1} parent=11 // pred_check_branch
          %175 = sbr.rel (%p173) target = $region20
        $region19: #{spatial_key_value.1} parent=11 // pred_region
          _
        $region20: #{spatial_key_value.1} parent=11 // pred_fallthru
          _
      $region12: #{spatial_key_value.1} parent=5 // pred_fallthru
        _
      %p176 = scmp.lt.s32.totalorder %s17, 2
      // Predicated region
      $region21: #{spatial_key_value.1} parent=5 // pred_check
        %p177 = pneg %p176
      $region22: #{spatial_key_value.1} parent=5 // pred_check_branch
        %179 = sbr.rel (%p177) target = $region24
      $region23: #{spatial_key_value.1} parent=5 // pred_region
        // Predicated region
        $region25: #{spatial_key_value.1} parent=23 // pred_check
          %p180 = pneg %p93
        $region26: #{spatial_key_value.1} parent=23 // pred_check_branch
          %182 = sbr.rel (%p180) target = $region28
        $region27: #{spatial_key_value.1} parent=23 // pred_region
          %s183 = smul.u32 2, %s25
          %p184 = scmp.lt.s32.totalorder %s24, 1
          %s185 = scalar_select %p184, %s24, 1
          %p186 = scmp.lt.s32.totalorder %s183, 1
          %s187 = scalar_select %p186, %s183, 1
          %s188 = smul.addr %s185, 64
          %s189 = sadd.s32 %s187, %s188
          %s190 = smul.addr %s189, 8
          %s191 = scalar_lea.vmem %s2, %s190
          %s192 = smul.u32 2, %s25
        $region28: #{spatial_key_value.1} parent=23 // pred_fallthru
          _
      $region24: #{spatial_key_value.1} parent=5 // pred_fallthru
        _
      %p193 = scmp.le.s32.totalorder 1, %s17
      %p194 = scmp.lt.s32.totalorder %s17, 3
      %p195 = pnand %p193, %p194
      %p196 = pneg %p195
      // Predicated region
      $region29: #{spatial_key_value.1} parent=5 // pred_check
        _
      $region30: #{spatial_key_value.1} parent=5 // pred_check_branch
        %198 = sbr.rel (%p195) target = $region32
      $region31: #{spatial_key_value.1} parent=5 // pred_region
        %s199 = ssub.s32 %s17, 1
        %p200 = pneg %p50
        %p201 = pneg %p47
        %p202 = pneg %p71
        %p203 = pneg %p68
        %s204 = smul.u32 2, %s27
        %p205 = scmp.lt.s32.totalorder %s26, 1
        %s206 = scalar_select %p205, %s26, 1
        %p207 = scmp.lt.s32.totalorder %s204, 1
        %s208 = scalar_select %p207, %s204, 1
        %s209 = smul.addr %s206, 64
        %s210 = sadd.s32 %s208, %s209
        %s211 = smul.addr %s210, 8
        %s212 = scalar_lea.vmem %s2, %s211
        %p213 = pneg %p99
        %p214 = pneg %p96
        %p215 = pneg %p127
        %p216 = pneg %p124
        %s217 = sand.u32 %s114, 1
        %s218 = scalar_lea.sflag [#allocation3], %s217
        %s219 = sand.u32 %s114, 1
        %s220 = smul.addr %s219, 256
        %s221 = scalar_lea.vmem [#allocation2], %s220
        %p222 = pneg %p155
        %p223 = pneg %p152
        %s224 = sand.u32 %s142, 1
        %s225 = scalar_lea.sflag [#allocation5], %s224
        %s226 = sand.u32 %s142, 1
        %s227 = smul.addr %s226, 512
        %s228 = scalar_lea.vmem [#allocation4], %s227
        %s229 = smul.u32 2, %s27
        %p230 = scmp.lt.s32.totalorder %s26, 1
        %s231 = scalar_select %p230, %s26, 1
        %p232 = scmp.lt.s32.totalorder %s229, 1
        %s233 = scalar_select %p232, %s229, 1
        %s234 = smul.addr %s231, 64
        %s235 = sadd.s32 %s233, %s234
        %s236 = smul.addr %s235, 8
        %s237 = scalar_lea.vmem %s2, %s236
        %s238 = smul.u32 2, %s27
        %s239 = smul.u32 2, %s27
        %s240 = smul.u32 2, %s27
        %v241 = vld [vmem:[%s0] sm:$0xff]
        %v242 = vld [vmem:[%s0 + $0x8] sm:$0xff]
        %v243 = vld [vmem:[%s0 + $0x10] sm:$0xff]
        %v244 = vld [vmem:[%s0 + $0x18] sm:$0xff]
        %v245 = vld [vmem:[%s0 + $0x20] sm:$0xff]
        %v246 = vld [vmem:[%s0 + $0x28] sm:$0xff]
        %v247 = vld [vmem:[%s0 + $0x30] sm:$0xff]
        %v248 = vld [vmem:[%s0 + $0x38] sm:$0xff]
        %v249 = vld [vmem:[%s0 + $0x40] sm:$0xff]
        %v250 = vld [vmem:[%s0 + $0x48] sm:$0xff]
        %v251 = vld [vmem:[%s0 + $0x50] sm:$0xff]
        %v252 = vld [vmem:[%s0 + $0x58] sm:$0xff]
        %v253 = vld [vmem:[%s0 + $0x60] sm:$0xff]
        %v254 = vld [vmem:[%s0 + $0x68] sm:$0xff]
        %v255 = vld [vmem:[%s0 + $0x70] sm:$0xff]
        %v256 = vld [vmem:[%s0 + $0x78] sm:$0xff]
        %v257 = vld [vmem:[%s0 + $0x80] sm:$0xff]
        %v258 = vld [vmem:[%s0 + $0x88] sm:$0xff]
        %v259 = vld [vmem:[%s0 + $0x90] sm:$0xff]
        %v260 = vld [vmem:[%s0 + $0x98] sm:$0xff]
        %v261 = vld [vmem:[%s0 + $0xa0] sm:$0xff]
        %v262 = vld [vmem:[%s0 + $0xa8] sm:$0xff]
        %v263 = vld [vmem:[%s0 + $0xb0] sm:$0xff]
        %v264 = vld [vmem:[%s0 + $0xb8] sm:$0xff]
        %v265 = vld [vmem:[%s0 + $0xc0] sm:$0xff]
        %v266 = vld [vmem:[%s0 + $0xc8] sm:$0xff]
        %v267 = vld [vmem:[%s0 + $0xd0] sm:$0xff]
        %v268 = vld [vmem:[%s0 + $0xd8] sm:$0xff]
        %v269 = vld [vmem:[%s0 + $0xe0] sm:$0xff]
        %v270 = vld [vmem:[%s0 + $0xe8] sm:$0xff]
        %v271 = vld [vmem:[%s0 + $0xf0] sm:$0xff]
        %v272 = vld [vmem:[%s0 + $0xf8] sm:$0xff]
        %v273 = vld [vmem:[%s0 + $0x100] sm:$0xff]
        %v274 = vld [vmem:[%s0 + $0x108] sm:$0xff]
        %v275 = vld [vmem:[%s0 + $0x110] sm:$0xff]
        %v276 = vld [vmem:[%s0 + $0x118] sm:$0xff]
        %v277 = vld [vmem:[%s0 + $0x120] sm:$0xff]
        %v278 = vld [vmem:[%s0 + $0x128] sm:$0xff]
        %v279 = vld [vmem:[%s0 + $0x130] sm:$0xff]
        %v280 = vld [vmem:[%s0 + $0x138] sm:$0xff]
        %v281 = vld [vmem:[%s0 + $0x140] sm:$0xff]
        %v282 = vld [vmem:[%s0 + $0x148] sm:$0xff]
        %v283 = vld [vmem:[%s0 + $0x150] sm:$0xff]
        %v284 = vld [vmem:[%s0 + $0x158] sm:$0xff]
        %v285 = vld [vmem:[%s0 + $0x160] sm:$0xff]
        %v286 = vld [vmem:[%s0 + $0x168] sm:$0xff]
        %v287 = vld [vmem:[%s0 + $0x170] sm:$0xff]
        %v288 = vld [vmem:[%s0 + $0x178] sm:$0xff]
        %v289 = vld [vmem:[%s0 + $0x180] sm:$0xff]
        %v290 = vld [vmem:[%s0 + $0x188] sm:$0xff]
        %v291 = vld [vmem:[%s0 + $0x190] sm:$0xff]
        %v292 = vld [vmem:[%s0 + $0x198] sm:$0xff]
        %v293 = vld [vmem:[%s0 + $0x1a0] sm:$0xff]
        %v294 = vld [vmem:[%s0 + $0x1a8] sm:$0xff]
        %v295 = vld [vmem:[%s0 + $0x1b0] sm:$0xff]
        %v296 = vld [vmem:[%s0 + $0x1b8] sm:$0xff]
        %v297 = vld [vmem:[%s0 + $0x1c0] sm:$0xff]
        %v298 = vld [vmem:[%s0 + $0x1c8] sm:$0xff]
        %v299 = vld [vmem:[%s0 + $0x1d0] sm:$0xff]
        %v300 = vld [vmem:[%s0 + $0x1d8] sm:$0xff]
        %v301 = vld [vmem:[%s0 + $0x1e0] sm:$0xff]
        %v302 = vld [vmem:[%s0 + $0x1e8] sm:$0xff]
        %v303 = vld [vmem:[%s0 + $0x1f0] sm:$0xff]
        %v304 = vld [vmem:[%s0 + $0x1f8] sm:$0xff]
        %v305 = vld [vmem:[%s0 + $0x200] sm:$0xff]
        %v306 = vld [vmem:[%s0 + $0x208] sm:$0xff]
        %v307 = vld [vmem:[%s0 + $0x210] sm:$0xff]
        %v308 = vld [vmem:[%s0 + $0x218] sm:$0xff]
        %v309 = vld [vmem:[%s0 + $0x220] sm:$0xff]
        %v310 = vld [vmem:[%s0 + $0x228] sm:$0xff]
        %v311 = vld [vmem:[%s0 + $0x230] sm:$0xff]
        %v312 = vld [vmem:[%s0 + $0x238] sm:$0xff]
        %v313 = vld [vmem:[%s0 + $0x240] sm:$0xff]
        %v314 = vld [vmem:[%s0 + $0x248] sm:$0xff]
        %v315 = vld [vmem:[%s0 + $0x250] sm:$0xff]
        %v316 = vld [vmem:[%s0 + $0x258] sm:$0xff]
        %v317 = vld [vmem:[%s0 + $0x260] sm:$0xff]
        %v318 = vld [vmem:[%s0 + $0x268] sm:$0xff]
        %v319 = vld [vmem:[%s0 + $0x270] sm:$0xff]
        %v320 = vld [vmem:[%s0 + $0x278] sm:$0xff]
        %v321 = vld [vmem:[%s0 + $0x280] sm:$0xff]
        %v322 = vld [vmem:[%s0 + $0x288] sm:$0xff]
        %v323 = vld [vmem:[%s0 + $0x290] sm:$0xff]
        %v324 = vld [vmem:[%s0 + $0x298] sm:$0xff]
        %v325 = vld [vmem:[%s0 + $0x2a0] sm:$0xff]
        %v326 = vld [vmem:[%s0 + $0x2a8] sm:$0xff]
        %v327 = vld [vmem:[%s0 + $0x2b0] sm:$0xff]
        %v328 = vld [vmem:[%s0 + $0x2b8] sm:$0xff]
        %v329 = vld [vmem:[%s0 + $0x2c0] sm:$0xff]
        %v330 = vld [vmem:[%s0 + $0x2c8] sm:$0xff]
        %v331 = vld [vmem:[%s0 + $0x2d0] sm:$0xff]
        %v332 = vld [vmem:[%s0 + $0x2d8] sm:$0xff]
        %v333 = vld [vmem:[%s0 + $0x2e0] sm:$0xff]
        %v334 = vld [vmem:[%s0 + $0x2e8] sm:$0xff]
        %v335 = vld [vmem:[%s0 + $0x2f0] sm:$0xff]
        %v336 = vld [vmem:[%s0 + $0x2f8] sm:$0xff]
        %v337 = vld [vmem:[%s237] sm:$0xff]
        %v338 = vld [vmem:[%s237 + $0x8] sm:$0xff]
        %v339 = vld [vmem:[%s237 + $0x10] sm:$0xff]
        %v340 = vld [vmem:[%s237 + $0x18] sm:$0xff]
        %v341 = vld [vmem:[%s237 + $0x20] sm:$0xff]
        %v342 = vld [vmem:[%s237 + $0x28] sm:$0xff]
        %v343 = vld [vmem:[%s237 + $0x30] sm:$0xff]
        %v344 = vld [vmem:[%s237 + $0x38] sm:$0xff]
        %v345 = vld [vmem:[%s237 + $0x40] sm:$0xff]
        %v346 = vld [vmem:[%s237 + $0x48] sm:$0xff]
        %v347 = vld [vmem:[%s237 + $0x50] sm:$0xff]
        %v348 = vld [vmem:[%s237 + $0x58] sm:$0xff]
        %v349 = vld [vmem:[%s237 + $0x60] sm:$0xff]
        %v350 = vld [vmem:[%s237 + $0x68] sm:$0xff]
        %v351 = vld [vmem:[%s237 + $0x70] sm:$0xff]
        %v352 = vld [vmem:[%s237 + $0x78] sm:$0xff]
        %v353 = vld [vmem:[%s237 + $0x80] sm:$0xff]
        %v354 = vld [vmem:[%s237 + $0x88] sm:$0xff]
        %v355 = vld [vmem:[%s237 + $0x90] sm:$0xff]
        %v356 = vld [vmem:[%s237 + $0x98] sm:$0xff]
        %v357 = vld [vmem:[%s237 + $0xa0] sm:$0xff]
        %v358 = vld [vmem:[%s237 + $0xa8] sm:$0xff]
        %v359 = vld [vmem:[%s237 + $0xb0] sm:$0xff]
        %v360 = vld [vmem:[%s237 + $0xb8] sm:$0xff]
        %v361 = vld [vmem:[%s237 + $0xc0] sm:$0xff]
        %v362 = vld [vmem:[%s237 + $0xc8] sm:$0xff]
        %v363 = vld [vmem:[%s237 + $0xd0] sm:$0xff]
        %v364 = vld [vmem:[%s237 + $0xd8] sm:$0xff]
        %v365 = vld [vmem:[%s237 + $0xe0] sm:$0xff]
        %v366 = vld [vmem:[%s237 + $0xe8] sm:$0xff]
        %v367 = vld [vmem:[%s237 + $0xf0] sm:$0xff]
        %v368 = vld [vmem:[%s237 + $0xf8] sm:$0xff]
        %v369 = vld [vmem:[%s237 + $0x100] sm:$0xff]
        %v370 = vld [vmem:[%s237 + $0x108] sm:$0xff]
        %v371 = vld [vmem:[%s237 + $0x110] sm:$0xff]
        %v372 = vld [vmem:[%s237 + $0x118] sm:$0xff]
        %v373 = vld [vmem:[%s237 + $0x120] sm:$0xff]
        %v374 = vld [vmem:[%s237 + $0x128] sm:$0xff]
        %v375 = vld [vmem:[%s237 + $0x130] sm:$0xff]
        %v376 = vld [vmem:[%s237 + $0x138] sm:$0xff]
        %v377 = vld [vmem:[%s237 + $0x140] sm:$0xff]
        %v378 = vld [vmem:[%s237 + $0x148] sm:$0xff]
        %v379 = vld [vmem:[%s237 + $0x150] sm:$0xff]
        %v380 = vld [vmem:[%s237 + $0x158] sm:$0xff]
        %v381 = vld [vmem:[%s237 + $0x160] sm:$0xff]
        %v382 = vld [vmem:[%s237 + $0x168] sm:$0xff]
        %v383 = vld [vmem:[%s237 + $0x170] sm:$0xff]
        %v384 = vld [vmem:[%s237 + $0x178] sm:$0xff]
        %v385 = vld [vmem:[%s237 + $0x180] sm:$0xff]
        %v386 = vld [vmem:[%s237 + $0x188] sm:$0xff]
        %v387 = vld [vmem:[%s237 + $0x190] sm:$0xff]
        %v388 = vld [vmem:[%s237 + $0x198] sm:$0xff]
        %v389 = vld [vmem:[%s237 + $0x1a0] sm:$0xff]
        %v390 = vld [vmem:[%s237 + $0x1a8] sm:$0xff]
        %v391 = vld [vmem:[%s237 + $0x1b0] sm:$0xff]
        %v392 = vld [vmem:[%s237 + $0x1b8] sm:$0xff]
        %v393 = vld [vmem:[%s237 + $0x1c0] sm:$0xff]
        %v394 = vld [vmem:[%s237 + $0x1c8] sm:$0xff]
        %v395 = vld [vmem:[%s237 + $0x1d0] sm:$0xff]
        %v396 = vld [vmem:[%s237 + $0x1d8] sm:$0xff]
        %v397 = vld [vmem:[%s237 + $0x1e0] sm:$0xff]
        %v398 = vld [vmem:[%s237 + $0x1e8] sm:$0xff]
        %v399 = vld [vmem:[%s237 + $0x1f0] sm:$0xff]
        %v400 = vld [vmem:[%s237 + $0x1f8] sm:$0xff]
        %v401 = vld [vmem:[%s1] sm:$0xff]
        %v402 = vld [vmem:[%s1 + $0x8] sm:$0xff]
        %v403 = vld [vmem:[%s1 + $0x10] sm:$0xff]
        %v404 = vld [vmem:[%s1 + $0x18] sm:$0xff]
        %v405 = vld [vmem:[%s1 + $0x20] sm:$0xff]
        %v406 = vld [vmem:[%s1 + $0x28] sm:$0xff]
        %v407 = vld [vmem:[%s1 + $0x30] sm:$0xff]
        %v408 = vld [vmem:[%s1 + $0x38] sm:$0xff]
        %v409 = vld [vmem:[%s1 + $0x40] sm:$0xff]
        %v410 = vld [vmem:[%s1 + $0x48] sm:$0xff]
        %v411 = vld [vmem:[%s1 + $0x50] sm:$0xff]
        %v412 = vld [vmem:[%s1 + $0x58] sm:$0xff]
        %v413 = vld [vmem:[%s1 + $0x60] sm:$0xff]
        %v414 = vld [vmem:[%s1 + $0x68] sm:$0xff]
        %v415 = vld [vmem:[%s1 + $0x70] sm:$0xff]
        %v416 = vld [vmem:[%s1 + $0x78] sm:$0xff]
        %v417 = vld [vmem:[%s1 + $0x80] sm:$0xff]
        %v418 = vld [vmem:[%s1 + $0x88] sm:$0xff]
        %v419 = vld [vmem:[%s1 + $0x90] sm:$0xff]
        %v420 = vld [vmem:[%s1 + $0x98] sm:$0xff]
        %v421 = vld [vmem:[%s1 + $0xa0] sm:$0xff]
        %v422 = vld [vmem:[%s1 + $0xa8] sm:$0xff]
        %v423 = vld [vmem:[%s1 + $0xb0] sm:$0xff]
        %v424 = vld [vmem:[%s1 + $0xb8] sm:$0xff]
        %v425 = vld [vmem:[%s1 + $0xc0] sm:$0xff]
        %v426 = vld [vmem:[%s1 + $0xc8] sm:$0xff]
        %v427 = vld [vmem:[%s1 + $0xd0] sm:$0xff]
        %v428 = vld [vmem:[%s1 + $0xd8] sm:$0xff]
        %v429 = vld [vmem:[%s1 + $0xe0] sm:$0xff]
        %v430 = vld [vmem:[%s1 + $0xe8] sm:$0xff]
        %v431 = vld [vmem:[%s1 + $0xf0] sm:$0xff]
        %v432 = vld [vmem:[%s1 + $0xf8] sm:$0xff]
        %v433 = vld [vmem:[%s1 + $0x100] sm:$0xff]
        %v434 = vld [vmem:[%s1 + $0x108] sm:$0xff]
        %v435 = vld [vmem:[%s1 + $0x110] sm:$0xff]
        %v436 = vld [vmem:[%s1 + $0x118] sm:$0xff]
        %v437 = vld [vmem:[%s1 + $0x120] sm:$0xff]
        %v438 = vld [vmem:[%s1 + $0x128] sm:$0xff]
        %v439 = vld [vmem:[%s1 + $0x130] sm:$0xff]
        %v440 = vld [vmem:[%s1 + $0x138] sm:$0xff]
        %v441 = vld [vmem:[%s1 + $0x140] sm:$0xff]
        %v442 = vld [vmem:[%s1 + $0x148] sm:$0xff]
        %v443 = vld [vmem:[%s1 + $0x150] sm:$0xff]
        %v444 = vld [vmem:[%s1 + $0x158] sm:$0xff]
        %v445 = vld [vmem:[%s1 + $0x160] sm:$0xff]
        %v446 = vld [vmem:[%s1 + $0x168] sm:$0xff]
        %v447 = vld [vmem:[%s1 + $0x170] sm:$0xff]
        %v448 = vld [vmem:[%s1 + $0x178] sm:$0xff]
        %450 = vset.pattern.permute.xlu0 0
        %451 = vperm.xlu0 %450, %v401
        %v452 = vpop.permute.xlu0 %451
        %455 = vset.pattern.permute.xlu0 0
        %456 = vperm.xlu0 %455, %v402
        %v457 = vpop.permute.xlu0 %456
        %460 = vset.pattern.permute.xlu0 0
        %461 = vperm.xlu0 %460, %v403
        %v462 = vpop.permute.xlu0 %461
        %465 = vset.pattern.permute.xlu0 0
        %466 = vperm.xlu0 %465, %v404
        %v467 = vpop.permute.xlu0 %466
        %470 = vset.pattern.permute.xlu0 0
        %471 = vperm.xlu0 %470, %v405
        %v472 = vpop.permute.xlu0 %471
        %475 = vset.pattern.permute.xlu0 0
        %476 = vperm.xlu0 %475, %v406
        %v477 = vpop.permute.xlu0 %476
        %480 = vset.pattern.permute.xlu0 0
        %481 = vperm.xlu0 %480, %v407
        %v482 = vpop.permute.xlu0 %481
        %485 = vset.pattern.permute.xlu0 0
        %486 = vperm.xlu0 %485, %v408
        %v487 = vpop.permute.xlu0 %486
        %490 = vset.pattern.permute.xlu0 0
        %491 = vperm.xlu0 %490, %v409
        %v492 = vpop.permute.xlu0 %491
        %495 = vset.pattern.permute.xlu0 0
        %496 = vperm.xlu0 %495, %v410
        %v497 = vpop.permute.xlu0 %496
        %500 = vset.pattern.permute.xlu0 0
        %501 = vperm.xlu0 %500, %v411
        %v502 = vpop.permute.xlu0 %501
        %505 = vset.pattern.permute.xlu0 0
        %506 = vperm.xlu0 %505, %v412
        %v507 = vpop.permute.xlu0 %506
        %510 = vset.pattern.permute.xlu0 0
        %511 = vperm.xlu0 %510, %v413
        %v512 = vpop.permute.xlu0 %511
        %515 = vset.pattern.permute.xlu0 0
        %516 = vperm.xlu0 %515, %v414
        %v517 = vpop.permute.xlu0 %516
        %520 = vset.pattern.permute.xlu0 0
        %521 = vperm.xlu0 %520, %v415
        %v522 = vpop.permute.xlu0 %521
        %525 = vset.pattern.permute.xlu0 0
        %526 = vperm.xlu0 %525, %v416
        %v527 = vpop.permute.xlu0 %526
        %530 = vset.pattern.permute.xlu0 0
        %531 = vperm.xlu0 %530, %v417
        %v532 = vpop.permute.xlu0 %531
        %535 = vset.pattern.permute.xlu0 0
        %536 = vperm.xlu0 %535, %v418
        %v537 = vpop.permute.xlu0 %536
        %540 = vset.pattern.permute.xlu0 0
        %541 = vperm.xlu0 %540, %v419
        %v542 = vpop.permute.xlu0 %541
        %545 = vset.pattern.permute.xlu0 0
        %546 = vperm.xlu0 %545, %v420
        %v547 = vpop.permute.xlu0 %546
        %550 = vset.pattern.permute.xlu0 0
        %551 = vperm.xlu0 %550, %v421
        %v552 = vpop.permute.xlu0 %551
        %555 = vset.pattern.permute.xlu0 0
        %556 = vperm.xlu0 %555, %v422
        %v557 = vpop.permute.xlu0 %556
        %560 = vset.pattern.permute.xlu0 0
        %561 = vperm.xlu0 %560, %v423
        %v562 = vpop.permute.xlu0 %561
        %565 = vset.pattern.permute.xlu0 0
        %566 = vperm.xlu0 %565, %v424
        %v567 = vpop.permute.xlu0 %566
        %570 = vset.pattern.permute.xlu0 0
        %571 = vperm.xlu0 %570, %v425
        %v572 = vpop.permute.xlu0 %571
        %575 = vset.pattern.permute.xlu0 0
        %576 = vperm.xlu0 %575, %v426
        %v577 = vpop.permute.xlu0 %576
        %580 = vset.pattern.permute.xlu0 0
        %581 = vperm.xlu0 %580, %v427
        %v582 = vpop.permute.xlu0 %581
        %585 = vset.pattern.permute.xlu0 0
        %586 = vperm.xlu0 %585, %v428
        %v587 = vpop.permute.xlu0 %586
        %590 = vset.pattern.permute.xlu0 0
        %591 = vperm.xlu0 %590, %v429
        %v592 = vpop.permute.xlu0 %591
        %595 = vset.pattern.permute.xlu0 0
        %596 = vperm.xlu0 %595, %v430
        %v597 = vpop.permute.xlu0 %596
        %600 = vset.pattern.permute.xlu0 0
        %601 = vperm.xlu0 %600, %v431
        %v602 = vpop.permute.xlu0 %601
        %605 = vset.pattern.permute.xlu0 0
        %606 = vperm.xlu0 %605, %v432
        %v607 = vpop.permute.xlu0 %606
        %610 = vset.pattern.permute.xlu0 0
        %611 = vperm.xlu0 %610, %v433
        %v612 = vpop.permute.xlu0 %611
        %615 = vset.pattern.permute.xlu0 0
        %616 = vperm.xlu0 %615, %v434
        %v617 = vpop.permute.xlu0 %616
        %620 = vset.pattern.permute.xlu0 0
        %621 = vperm.xlu0 %620, %v435
        %v622 = vpop.permute.xlu0 %621
        %625 = vset.pattern.permute.xlu0 0
        %626 = vperm.xlu0 %625, %v436
        %v627 = vpop.permute.xlu0 %626
        %630 = vset.pattern.permute.xlu0 0
        %631 = vperm.xlu0 %630, %v437
        %v632 = vpop.permute.xlu0 %631
        %635 = vset.pattern.permute.xlu0 0
        %636 = vperm.xlu0 %635, %v438
        %v637 = vpop.permute.xlu0 %636
        %640 = vset.pattern.permute.xlu0 0
        %641 = vperm.xlu0 %640, %v439
        %v642 = vpop.permute.xlu0 %641
        %645 = vset.pattern.permute.xlu0 0
        %646 = vperm.xlu0 %645, %v440
        %v647 = vpop.permute.xlu0 %646
        %650 = vset.pattern.permute.xlu0 0
        %651 = vperm.xlu0 %650, %v441
        %v652 = vpop.permute.xlu0 %651
        %655 = vset.pattern.permute.xlu0 0
        %656 = vperm.xlu0 %655, %v442
        %v657 = vpop.permute.xlu0 %656
        %660 = vset.pattern.permute.xlu0 0
        %661 = vperm.xlu0 %660, %v443
        %v662 = vpop.permute.xlu0 %661
        %665 = vset.pattern.permute.xlu0 0
        %666 = vperm.xlu0 %665, %v444
        %v667 = vpop.permute.xlu0 %666
        %670 = vset.pattern.permute.xlu0 0
        %671 = vperm.xlu0 %670, %v445
        %v672 = vpop.permute.xlu0 %671
        %675 = vset.pattern.permute.xlu0 0
        %676 = vperm.xlu0 %675, %v446
        %v677 = vpop.permute.xlu0 %676
        %680 = vset.pattern.permute.xlu0 0
        %681 = vperm.xlu0 %680, %v447
        %v682 = vpop.permute.xlu0 %681
        %685 = vset.pattern.permute.xlu0 0
        %686 = vperm.xlu0 %685, %v448
        %v687 = vpop.permute.xlu0 %686
        %689 = vmatprep.subr.mxu0 %v338
        %690 = vmatpush1.msra.mxu0 %v337
        %691 = vmatprep.subr.mxu0 %v340
        %692 = vmatpush1.msra.mxu0 %v339
        %693 = vmatprep.subr.mxu0 %v342
        %694 = vmatpush1.msra.mxu0 %v341
        %695 = vmatprep.subr.mxu0 %v344
        %696 = vmatpush1.msra.mxu0 %v343
        %697 = vmatprep.subr.mxu0 %v346
        %698 = vmatpush1.msra.mxu0 %v345
        %699 = vmatprep.subr.mxu0 %v348
        %700 = vmatpush1.msra.mxu0 %v347
        %701 = vmatprep.subr.mxu0 %v350
        %702 = vmatpush1.msra.mxu0 %v349
        %703 = vmatprep.subr.mxu0 %v352
        %704 = vmatpush1.msra.mxu0 %v351
        %705 = vmatprep.subr.mxu0 %v354
        %706 = vmatpush1.msra.mxu0 %v353
        %707 = vmatprep.subr.mxu0 %v356
        %708 = vmatpush1.msra.mxu0 %v355
        %709 = vmatprep.subr.mxu0 %v358
        %710 = vmatpush1.msra.mxu0 %v357
        %711 = vmatprep.subr.mxu0 %v360
        %712 = vmatpush1.msra.mxu0 %v359
        %713 = vmatprep.subr.mxu0 %v362
        %714 = vmatpush1.msra.mxu0 %v361
        %715 = vmatprep.subr.mxu0 %v364
        %716 = vmatpush1.msra.mxu0 %v363
        %717 = vmatprep.subr.mxu0 %v366
        %718 = vmatpush1.msra.mxu0 %v365
        %719 = vmatprep.subr.mxu0 %v368
        %720 = vmatpush1.msra.mxu0 %v367
        %721 = vmatprep.subr.mxu0 %v370
        %722 = vmatpush1.msra.mxu0 %v369
        %723 = vmatprep.subr.mxu0 %v372
        %724 = vmatpush1.msra.mxu0 %v371
        %725 = vmatprep.subr.mxu0 %v374
        %726 = vmatpush1.msra.mxu0 %v373
        %727 = vmatprep.subr.mxu0 %v376
        %728 = vmatpush1.msra.mxu0 %v375
        %729 = vmatprep.subr.mxu0 %v378
        %730 = vmatpush1.msra.mxu0 %v377
        %731 = vmatprep.subr.mxu0 %v380
        %732 = vmatpush1.msra.mxu0 %v379
        %733 = vmatprep.subr.mxu0 %v382
        %734 = vmatpush1.msra.mxu0 %v381
        %735 = vmatprep.subr.mxu0 %v384
        %736 = vmatpush1.msra.mxu0 %v383
        %737 = vmatprep.subr.mxu0 %v386
        %738 = vmatpush1.msra.mxu0 %v385
        %739 = vmatprep.subr.mxu0 %v388
        %740 = vmatpush1.msra.mxu0 %v387
        %741 = vmatprep.subr.mxu0 %v390
        %742 = vmatpush1.msra.mxu0 %v389
        %743 = vmatprep.subr.mxu0 %v392
        %744 = vmatpush1.msra.mxu0 %v391
        %745 = vmatprep.subr.mxu0 %v394
        %746 = vmatpush1.msra.mxu0 %v393
        %747 = vmatprep.subr.mxu0 %v396
        %748 = vmatpush1.msra.mxu0 %v395
        %749 = vmatprep.subr.mxu0 %v398
        %750 = vmatpush1.msra.mxu0 %v397
        %751 = vmatprep.subr.mxu0 %v400
        %752 = vmatpush1.msra.mxu0 %v399
        %753 = vmatprep.mubr.f32.mxu0 %v242
        %754 = vmatmul.mubr.f32.gmra.mrb[0].mxu0 %v241
        %v755 = vpop.f32.mrb[0].mxu0
        %v756 = vadd.f32 %v452, %v755
        %v757 = vpop.f32.mrb[0].mxu0
        %v758 = vadd.f32 %v452, %v757
        %759 = vmatprep.mubr.f32.mxu0 %v244
        %760 = vmatmul.mubr.f32.gmra.mrb[0].mxu0 %v243
        %v761 = vpop.f32.mrb[0].mxu0
        %v762 = vadd.f32 %v457, %v761
        %v763 = vpop.f32.mrb[0].mxu0
        %v764 = vadd.f32 %v457, %v763
        %765 = vmatprep.mubr.f32.mxu0 %v246
        %766 = vmatmul.mubr.f32.gmra.mrb[0].mxu0 %v245
        %v767 = vpop.f32.mrb[0].mxu0
        %v768 = vadd.f32 %v462, %v767
        %v769 = vpop.f32.mrb[0].mxu0
        %v770 = vadd.f32 %v462, %v769
        %771 = vmatprep.mubr.f32.mxu0 %v248
        %772 = vmatmul.mubr.f32.gmra.mrb[0].mxu0 %v247
        %v773 = vpop.f32.mrb[0].mxu0
        %v774 = vadd.f32 %v467, %v773
        %v775 = vpop.f32.mrb[0].mxu0
        %v776 = vadd.f32 %v467, %v775
        %777 = vmatprep.mubr.f32.mxu0 %v250
        %778 = vmatmul.mubr.f32.gmra.mrb[0].mxu0 %v249
        %v779 = vpop.f32.mrb[0].mxu0
        %v780 = vadd.f32 %v472, %v779
        %v781 = vpop.f32.mrb[0].mxu0
        %v782 = vadd.f32 %v472, %v781
        %783 = vmatprep.mubr.f32.mxu0 %v252
        %784 = vmatmul.mubr.f32.gmra.mrb[0].mxu0 %v251
        %v785 = vpop.f32.mrb[0].mxu0
        %v786 = vadd.f32 %v477, %v785
        %v787 = vpop.f32.mrb[0].mxu0
        %v788 = vadd.f32 %v477, %v787
        %789 = vmatprep.mubr.f32.mxu0 %v254
        %790 = vmatmul.mubr.f32.gmra.mrb[0].mxu0 %v253
        %v791 = vpop.f32.mrb[0].mxu0
        %v792 = vadd.f32 %v482, %v791
        %v793 = vpop.f32.mrb[0].mxu0
        %v794 = vadd.f32 %v482, %v793
        %795 = vmatprep.mubr.f32.mxu0 %v256
        %796 = vmatmul.mubr.f32.gmra.mrb[0].mxu0 %v255
        %v797 = vpop.f32.mrb[0].mxu0
        %v798 = vadd.f32 %v487, %v797
        %v799 = vpop.f32.mrb[0].mxu0
        %v800 = vadd.f32 %v487, %v799
        %801 = vmatprep.mubr.f32.mxu0 %v258
        %802 = vmatmul.mubr.f32.gmra.mrb[0].mxu0 %v257
        %v803 = vpop.f32.mrb[0].mxu0
        %v804 = vadd.f32 %v492, %v803
        %v805 = vpop.f32.mrb[0].mxu0
        %v806 = vadd.f32 %v492, %v805
        %807 = vmatprep.mubr.f32.mxu0 %v260
        %808 = vmatmul.mubr.f32.gmra.mrb[0].mxu0 %v259
        %v809 = vpop.f32.mrb[0].mxu0
        %v810 = vadd.f32 %v497, %v809
        %v811 = vpop.f32.mrb[0].mxu0
        %v812 = vadd.f32 %v497, %v811
        %813 = vmatprep.mubr.f32.mxu0 %v262
        %814 = vmatmul.mubr.f32.gmra.mrb[0].mxu0 %v261
        %v815 = vpop.f32.mrb[0].mxu0
        %v816 = vadd.f32 %v502, %v815
        %v817 = vpop.f32.mrb[0].mxu0
        %v818 = vadd.f32 %v502, %v817
        %819 = vmatprep.mubr.f32.mxu0 %v264
        %820 = vmatmul.mubr.f32.gmra.mrb[0].mxu0 %v263
        %v821 = vpop.f32.mrb[0].mxu0
        %v822 = vadd.f32 %v507, %v821
        %v823 = vpop.f32.mrb[0].mxu0
        %v824 = vadd.f32 %v507, %v823
        %825 = vmatprep.mubr.f32.mxu0 %v266
        %826 = vmatmul.mubr.f32.gmra.mrb[0].mxu0 %v265
        %v827 = vpop.f32.mrb[0].mxu0
        %v828 = vadd.f32 %v512, %v827
        %v829 = vpop.f32.mrb[0].mxu0
        %v830 = vadd.f32 %v512, %v829
        %831 = vmatprep.mubr.f32.mxu0 %v268
        %832 = vmatmul.mubr.f32.gmra.mrb[0].mxu0 %v267
        %v833 = vpop.f32.mrb[0].mxu0
        %v834 = vadd.f32 %v517, %v833
        %v835 = vpop.f32.mrb[0].mxu0
        %v836 = vadd.f32 %v517, %v835
        %837 = vmatprep.mubr.f32.mxu0 %v270
        %838 = vmatmul.mubr.f32.gmra.mrb[0].mxu0 %v269
        %v839 = vpop.f32.mrb[0].mxu0
        %v840 = vadd.f32 %v522, %v839
        %v841 = vpop.f32.mrb[0].mxu0
        %v842 = vadd.f32 %v522, %v841
        %843 = vmatprep.mubr.f32.mxu0 %v272
        %844 = vmatmul.mubr.f32.gmra.mrb[0].mxu0 %v271
        %v845 = vpop.f32.mrb[0].mxu0
        %v846 = vadd.f32 %v527, %v845
        %v847 = vpop.f32.mrb[0].mxu0
        %v848 = vadd.f32 %v527, %v847
        %849 = vmatprep.mubr.f32.mxu0 %v274
        %850 = vmatmul.mubr.f32.gmra.mrb[0].mxu0 %v273
        %v851 = vpop.f32.mrb[0].mxu0
        %v852 = vadd.f32 %v532, %v851
        %v853 = vpop.f32.mrb[0].mxu0
        %v854 = vadd.f32 %v532, %v853
        %855 = vmatprep.mubr.f32.mxu0 %v276
        %856 = vmatmul.mubr.f32.gmra.mrb[0].mxu0 %v275
        %v857 = vpop.f32.mrb[0].mxu0
        %v858 = vadd.f32 %v537, %v857
        %v859 = vpop.f32.mrb[0].mxu0
        %v860 = vadd.f32 %v537, %v859
        %861 = vmatprep.mubr.f32.mxu0 %v278
        %862 = vmatmul.mubr.f32.gmra.mrb[0].mxu0 %v277
        %v863 = vpop.f32.mrb[0].mxu0
        %v864 = vadd.f32 %v542, %v863
        %v865 = vpop.f32.mrb[0].mxu0
        %v866 = vadd.f32 %v542, %v865
        %867 = vmatprep.mubr.f32.mxu0 %v280
        %868 = vmatmul.mubr.f32.gmra.mrb[0].mxu0 %v279
        %v869 = vpop.f32.mrb[0].mxu0
        %v870 = vadd.f32 %v547, %v869
        %v871 = vpop.f32.mrb[0].mxu0
        %v872 = vadd.f32 %v547, %v871
        %873 = vmatprep.mubr.f32.mxu0 %v282
        %874 = vmatmul.mubr.f32.gmra.mrb[0].mxu0 %v281
        %v875 = vpop.f32.mrb[0].mxu0
        %v876 = vadd.f32 %v552, %v875
        %v877 = vpop.f32.mrb[0].mxu0
        %v878 = vadd.f32 %v552, %v877
        %879 = vmatprep.mubr.f32.mxu0 %v284
        %880 = vmatmul.mubr.f32.gmra.mrb[0].mxu0 %v283
        %v881 = vpop.f32.mrb[0].mxu0
        %v882 = vadd.f32 %v557, %v881
        %v883 = vpop.f32.mrb[0].mxu0
        %v884 = vadd.f32 %v557, %v883
        %885 = vmatprep.mubr.f32.mxu0 %v286
        %886 = vmatmul.mubr.f32.gmra.mrb[0].mxu0 %v285
        %v887 = vpop.f32.mrb[0].mxu0
        %v888 = vadd.f32 %v562, %v887
        %v889 = vpop.f32.mrb[0].mxu0
        %v890 = vadd.f32 %v562, %v889
        %891 = vmatprep.mubr.f32.mxu0 %v288
        %892 = vmatmul.mubr.f32.gmra.mrb[0].mxu0 %v287
        %v893 = vpop.f32.mrb[0].mxu0
        %v894 = vadd.f32 %v567, %v893
        %v895 = vpop.f32.mrb[0].mxu0
        %v896 = vadd.f32 %v567, %v895
        %897 = vmatprep.mubr.f32.mxu0 %v290
        %898 = vmatmul.mubr.f32.gmra.mrb[0].mxu0 %v289
        %v899 = vpop.f32.mrb[0].mxu0
        %v900 = vadd.f32 %v572, %v899
        %v901 = vpop.f32.mrb[0].mxu0
        %v902 = vadd.f32 %v572, %v901
        %903 = vmatprep.mubr.f32.mxu0 %v292
        %904 = vmatmul.mubr.f32.gmra.mrb[0].mxu0 %v291
        %v905 = vpop.f32.mrb[0].mxu0
        %v906 = vadd.f32 %v577, %v905
        %v907 = vpop.f32.mrb[0].mxu0
        %v908 = vadd.f32 %v577, %v907
        %909 = vmatprep.mubr.f32.mxu0 %v294
        %910 = vmatmul.mubr.f32.gmra.mrb[0].mxu0 %v293
        %v911 = vpop.f32.mrb[0].mxu0
        %v912 = vadd.f32 %v582, %v911
        %v913 = vpop.f32.mrb[0].mxu0
        %v914 = vadd.f32 %v582, %v913
        %915 = vmatprep.mubr.f32.mxu0 %v296
        %916 = vmatmul.mubr.f32.gmra.mrb[0].mxu0 %v295
        %v917 = vpop.f32.mrb[0].mxu0
        %v918 = vadd.f32 %v587, %v917
        %v919 = vpop.f32.mrb[0].mxu0
        %v920 = vadd.f32 %v587, %v919
        %921 = vmatprep.mubr.f32.mxu0 %v298
        %922 = vmatmul.mubr.f32.gmra.mrb[0].mxu0 %v297
        %v923 = vpop.f32.mrb[0].mxu0
        %v924 = vadd.f32 %v592, %v923
        %v925 = vpop.f32.mrb[0].mxu0
        %v926 = vadd.f32 %v592, %v925
        %927 = vmatprep.mubr.f32.mxu0 %v300
        %928 = vmatmul.mubr.f32.gmra.mrb[0].mxu0 %v299
        %v929 = vpop.f32.mrb[0].mxu0
        %v930 = vadd.f32 %v597, %v929
        %v931 = vpop.f32.mrb[0].mxu0
        %v932 = vadd.f32 %v597, %v931
        %933 = vmatprep.mubr.f32.mxu0 %v302
        %934 = vmatmul.mubr.f32.gmra.mrb[0].mxu0 %v301
        %v935 = vpop.f32.mrb[0].mxu0
        %v936 = vadd.f32 %v602, %v935
        %v937 = vpop.f32.mrb[0].mxu0
        %v938 = vadd.f32 %v602, %v937
        %939 = vmatprep.mubr.f32.mxu0 %v304
        %940 = vmatmul.mubr.f32.gmra.mrb[0].mxu0 %v303
        %v941 = vpop.f32.mrb[0].mxu0
        %v942 = vadd.f32 %v607, %v941
        %v943 = vpop.f32.mrb[0].mxu0
        %v944 = vadd.f32 %v607, %v943
        %945 = vmatprep.mubr.f32.mxu0 %v306
        %946 = vmatmul.mubr.f32.gmra.mrb[0].mxu0 %v305
        %v947 = vpop.f32.mrb[0].mxu0
        %v948 = vadd.f32 %v612, %v947
        %v949 = vpop.f32.mrb[0].mxu0
        %v950 = vadd.f32 %v612, %v949
        %951 = vmatprep.mubr.f32.mxu0 %v308
        %952 = vmatmul.mubr.f32.gmra.mrb[0].mxu0 %v307
        %v953 = vpop.f32.mrb[0].mxu0
        %v954 = vadd.f32 %v617, %v953
        %v955 = vpop.f32.mrb[0].mxu0
        %v956 = vadd.f32 %v617, %v955
        %957 = vmatprep.mubr.f32.mxu0 %v310
        %958 = vmatmul.mubr.f32.gmra.mrb[0].mxu0 %v309
        %v959 = vpop.f32.mrb[0].mxu0
        %v960 = vadd.f32 %v622, %v959
        %v961 = vpop.f32.mrb[0].mxu0
        %v962 = vadd.f32 %v622, %v961
        %963 = vmatprep.mubr.f32.mxu0 %v312
        %964 = vmatmul.mubr.f32.gmra.mrb[0].mxu0 %v311
        %v965 = vpop.f32.mrb[0].mxu0
        %v966 = vadd.f32 %v627, %v965
        %v967 = vpop.f32.mrb[0].mxu0
        %v968 = vadd.f32 %v627, %v967
        %969 = vmatprep.mubr.f32.mxu0 %v314
        %970 = vmatmul.mubr.f32.gmra.mrb[0].mxu0 %v313
        %v971 = vpop.f32.mrb[0].mxu0
        %v972 = vadd.f32 %v632, %v971
        %v973 = vpop.f32.mrb[0].mxu0
        %v974 = vadd.f32 %v632, %v973
        %975 = vmatprep.mubr.f32.mxu0 %v316
        %976 = vmatmul.mubr.f32.gmra.mrb[0].mxu0 %v315
        %v977 = vpop.f32.mrb[0].mxu0
        %v978 = vadd.f32 %v637, %v977
        %v979 = vpop.f32.mrb[0].mxu0
        %v980 = vadd.f32 %v637, %v979
        %981 = vmatprep.mubr.f32.mxu0 %v318
        %982 = vmatmul.mubr.f32.gmra.mrb[0].mxu0 %v317
        %v983 = vpop.f32.mrb[0].mxu0
        %v984 = vadd.f32 %v642, %v983
        %v985 = vpop.f32.mrb[0].mxu0
        %v986 = vadd.f32 %v642, %v985
        %987 = vmatprep.mubr.f32.mxu0 %v320
        %988 = vmatmul.mubr.f32.gmra.mrb[0].mxu0 %v319
        %v989 = vpop.f32.mrb[0].mxu0
        %v990 = vadd.f32 %v647, %v989
        %v991 = vpop.f32.mrb[0].mxu0
        %v992 = vadd.f32 %v647, %v991
        %993 = vmatprep.mubr.f32.mxu0 %v322
        %994 = vmatmul.mubr.f32.gmra.mrb[0].mxu0 %v321
        %v995 = vpop.f32.mrb[0].mxu0
        %v996 = vadd.f32 %v652, %v995
        %v997 = vpop.f32.mrb[0].mxu0
        %v998 = vadd.f32 %v652, %v997
        %999 = vmatprep.mubr.f32.mxu0 %v324
        %1000 = vmatmul.mubr.f32.gmra.mrb[0].mxu0 %v323
        %v1001 = vpop.f32.mrb[0].mxu0
        %v1002 = vadd.f32 %v657, %v1001
        %v1003 = vpop.f32.mrb[0].mxu0
        %v1004 = vadd.f32 %v657, %v1003
        %1005 = vmatprep.mubr.f32.mxu0 %v326
        %1006 = vmatmul.mubr.f32.gmra.mrb[0].mxu0 %v325
        %v1007 = vpop.f32.mrb[0].mxu0
        %v1008 = vadd.f32 %v662, %v1007
        %v1009 = vpop.f32.mrb[0].mxu0
        %v1010 = vadd.f32 %v662, %v1009
        %1011 = vmatprep.mubr.f32.mxu0 %v328
        %1012 = vmatmul.mubr.f32.gmra.mrb[0].mxu0 %v327
        %v1013 = vpop.f32.mrb[0].mxu0
        %v1014 = vadd.f32 %v667, %v1013
        %v1015 = vpop.f32.mrb[0].mxu0
        %v1016 = vadd.f32 %v667, %v1015
        %1017 = vmatprep.mubr.f32.mxu0 %v330
        %1018 = vmatmul.mubr.f32.gmra.mrb[0].mxu0 %v329
        %v1019 = vpop.f32.mrb[0].mxu0
        %v1020 = vadd.f32 %v672, %v1019
        %v1021 = vpop.f32.mrb[0].mxu0
        %v1022 = vadd.f32 %v672, %v1021
        %1023 = vmatprep.mubr.f32.mxu0 %v332
        %1024 = vmatmul.mubr.f32.gmra.mrb[0].mxu0 %v331
        %v1025 = vpop.f32.mrb[0].mxu0
        %v1026 = vadd.f32 %v677, %v1025
        %v1027 = vpop.f32.mrb[0].mxu0
        %v1028 = vadd.f32 %v677, %v1027
        %1029 = vmatprep.mubr.f32.mxu0 %v334
        %1030 = vmatmul.mubr.f32.gmra.mrb[0].mxu0 %v333
        %v1031 = vpop.f32.mrb[0].mxu0
        %v1032 = vadd.f32 %v682, %v1031
        %v1033 = vpop.f32.mrb[0].mxu0
        %v1034 = vadd.f32 %v682, %v1033
        %1035 = vmatprep.mubr.f32.mxu0 %v336
        %1036 = vmatmul.mubr.f32.gmra.mrb[0].mxu0 %v335
        %v1037 = vpop.f32.mrb[0].mxu0
        %v1038 = vadd.f32 %v687, %v1037
        %v1039 = vpop.f32.mrb[0].mxu0
        %v1040 = vadd.f32 %v687, %v1039
        %1041 = vdwg.mxu0
        %1042 = vst [vmem:[%s221] sm:$0xff] %v756
        %1043 = vst [vmem:[%s221 + $0x8] sm:$0xff] %v758
        %1044 = vst [vmem:[%s221 + $0x10] sm:$0xff] %v762
        %1045 = vst [vmem:[%s221 + $0x18] sm:$0xff] %v764
        %1046 = vst [vmem:[%s221 + $0x20] sm:$0xff] %v768
        %1047 = vst [vmem:[%s221 + $0x28] sm:$0xff] %v770
        %1048 = vst [vmem:[%s221 + $0x30] sm:$0xff] %v774
        %1049 = vst [vmem:[%s221 + $0x38] sm:$0xff] %v776
        %1050 = vst [vmem:[%s221 + $0x40] sm:$0xff] %v780
        %1051 = vst [vmem:[%s221 + $0x48] sm:$0xff] %v782
        %1052 = vst [vmem:[%s221 + $0x50] sm:$0xff] %v786
        %1053 = vst [vmem:[%s221 + $0x58] sm:$0xff] %v788
        %1054 = vst [vmem:[%s221 + $0x60] sm:$0xff] %v792
        %1055 = vst [vmem:[%s221 + $0x68] sm:$0xff] %v794
        %1056 = vst [vmem:[%s221 + $0x70] sm:$0xff] %v798
        %1057 = vst [vmem:[%s221 + $0x78] sm:$0xff] %v800
        %1058 = vst [vmem:[%s221 + $0x80] sm:$0xff] %v804
        %1059 = vst [vmem:[%s221 + $0x88] sm:$0xff] %v806
        %1060 = vst [vmem:[%s221 + $0x90] sm:$0xff] %v810
        %1061 = vst [vmem:[%s221 + $0x98] sm:$0xff] %v812
        %1062 = vst [vmem:[%s221 + $0xa0] sm:$0xff] %v816
        %1063 = vst [vmem:[%s221 + $0xa8] sm:$0xff] %v818
        %1064 = vst [vmem:[%s221 + $0xb0] sm:$0xff] %v822
        %1065 = vst [vmem:[%s221 + $0xb8] sm:$0xff] %v824
        %1066 = vst [vmem:[%s221 + $0xc0] sm:$0xff] %v828
        %1067 = vst [vmem:[%s221 + $0xc8] sm:$0xff] %v830
        %1068 = vst [vmem:[%s221 + $0xd0] sm:$0xff] %v834
        %1069 = vst [vmem:[%s221 + $0xd8] sm:$0xff] %v836
        %1070 = vst [vmem:[%s221 + $0xe0] sm:$0xff] %v840
        %1071 = vst [vmem:[%s221 + $0xe8] sm:$0xff] %v842
        %1072 = vst [vmem:[%s221 + $0xf0] sm:$0xff] %v846
        %1073 = vst [vmem:[%s221 + $0xf8] sm:$0xff] %v848
        %1074 = vst [vmem:[%s228] sm:$0xff] %v852
        %1075 = vst [vmem:[%s228 + $0x8] sm:$0xff] %v854
        %1076 = vst [vmem:[%s228 + $0x10] sm:$0xff] %v858
        %1077 = vst [vmem:[%s228 + $0x18] sm:$0xff] %v860
        %1078 = vst [vmem:[%s228 + $0x20] sm:$0xff] %v864
        %1079 = vst [vmem:[%s228 + $0x28] sm:$0xff] %v866
        %1080 = vst [vmem:[%s228 + $0x30] sm:$0xff] %v870
        %1081 = vst [vmem:[%s228 + $0x38] sm:$0xff] %v872
        %1082 = vst [vmem:[%s228 + $0x40] sm:$0xff] %v876
        %1083 = vst [vmem:[%s228 + $0x48] sm:$0xff] %v878
        %1084 = vst [vmem:[%s228 + $0x50] sm:$0xff] %v882
        %1085 = vst [vmem:[%s228 + $0x58] sm:$0xff] %v884
        %1086 = vst [vmem:[%s228 + $0x60] sm:$0xff] %v888
        %1087 = vst [vmem:[%s228 + $0x68] sm:$0xff] %v890
        %1088 = vst [vmem:[%s228 + $0x70] sm:$0xff] %v894
        %1089 = vst [vmem:[%s228 + $0x78] sm:$0xff] %v896
        %1090 = vst [vmem:[%s228 + $0x80] sm:$0xff] %v900
        %1091 = vst [vmem:[%s228 + $0x88] sm:$0xff] %v902
        %1092 = vst [vmem:[%s228 + $0x90] sm:$0xff] %v906
        %1093 = vst [vmem:[%s228 + $0x98] sm:$0xff] %v908
        %1094 = vst [vmem:[%s228 + $0xa0] sm:$0xff] %v912
        %1095 = vst [vmem:[%s228 + $0xa8] sm:$0xff] %v914
        %1096 = vst [vmem:[%s228 + $0xb0] sm:$0xff] %v918
        %1097 = vst [vmem:[%s228 + $0xb8] sm:$0xff] %v920
        %1098 = vst [vmem:[%s228 + $0xc0] sm:$0xff] %v924
        %1099 = vst [vmem:[%s228 + $0xc8] sm:$0xff] %v926
        %1100 = vst [vmem:[%s228 + $0xd0] sm:$0xff] %v930
        %1101 = vst [vmem:[%s228 + $0xd8] sm:$0xff] %v932
        %1102 = vst [vmem:[%s228 + $0xe0] sm:$0xff] %v936
        %1103 = vst [vmem:[%s228 + $0xe8] sm:$0xff] %v938
        %1104 = vst [vmem:[%s228 + $0xf0] sm:$0xff] %v942
        %1105 = vst [vmem:[%s228 + $0xf8] sm:$0xff] %v944
        %1106 = vst [vmem:[%s228 + $0x100] sm:$0xff] %v948
        %1107 = vst [vmem:[%s228 + $0x108] sm:$0xff] %v950
        %1108 = vst [vmem:[%s228 + $0x110] sm:$0xff] %v954
        %1109 = vst [vmem:[%s228 + $0x118] sm:$0xff] %v956
        %1110 = vst [vmem:[%s228 + $0x120] sm:$0xff] %v960
        %1111 = vst [vmem:[%s228 + $0x128] sm:$0xff] %v962
        %1112 = vst [vmem:[%s228 + $0x130] sm:$0xff] %v966
        %1113 = vst [vmem:[%s228 + $0x138] sm:$0xff] %v968
        %1114 = vst [vmem:[%s228 + $0x140] sm:$0xff] %v972
        %1115 = vst [vmem:[%s228 + $0x148] sm:$0xff] %v974
        %1116 = vst [vmem:[%s228 + $0x150] sm:$0xff] %v978
        %1117 = vst [vmem:[%s228 + $0x158] sm:$0xff] %v980
        %1118 = vst [vmem:[%s228 + $0x160] sm:$0xff] %v984
        %1119 = vst [vmem:[%s228 + $0x168] sm:$0xff] %v986
        %1120 = vst [vmem:[%s228 + $0x170] sm:$0xff] %v990
        %1121 = vst [vmem:[%s228 + $0x178] sm:$0xff] %v992
        %1122 = vst [vmem:[%s228 + $0x180] sm:$0xff] %v996
        %1123 = vst [vmem:[%s228 + $0x188] sm:$0xff] %v998
        %1124 = vst [vmem:[%s228 + $0x190] sm:$0xff] %v1002
        %1125 = vst [vmem:[%s228 + $0x198] sm:$0xff] %v1004
        %1126 = vst [vmem:[%s228 + $0x1a0] sm:$0xff] %v1008
        %1127 = vst [vmem:[%s228 + $0x1a8] sm:$0xff] %v1010
        %1128 = vst [vmem:[%s228 + $0x1b0] sm:$0xff] %v1014
        %1129 = vst [vmem:[%s228 + $0x1b8] sm:$0xff] %v1016
        %1130 = vst [vmem:[%s228 + $0x1c0] sm:$0xff] %v1020
        %1131 = vst [vmem:[%s228 + $0x1c8] sm:$0xff] %v1022
        %1132 = vst [vmem:[%s228 + $0x1d0] sm:$0xff] %v1026
        %1133 = vst [vmem:[%s228 + $0x1d8] sm:$0xff] %v1028
        %1134 = vst [vmem:[%s228 + $0x1e0] sm:$0xff] %v1032
        %1135 = vst [vmem:[%s228 + $0x1e8] sm:$0xff] %v1034
        %1136 = vst [vmem:[%s228 + $0x1f0] sm:$0xff] %v1038
        %1137 = vst [vmem:[%s228 + $0x1f8] sm:$0xff] %v1040
        %s1138 = sand.u32 %s114, 1
        %s1139 = scalar_lea.sflag [#allocation3], %s1138
        %s1140 = sand.u32 %s114, 1
        %s1141 = smul.addr %s1140, 256
        %s1142 = scalar_lea.vmem [#allocation2], %s1141
        %s1143 = sand.u32 %s142, 1
        %s1144 = scalar_lea.sflag [#allocation5], %s1143
        %s1145 = sand.u32 %s142, 1
        %s1146 = smul.addr %s1145, 512
        %s1147 = scalar_lea.vmem [#allocation4], %s1146
        // Predicated region
        $region33: #{spatial_key_value.1} parent=31 // pred_check
          %p1148 = pneg %p124
        $region34: #{spatial_key_value.1} parent=31 // pred_check_branch
          %1150 = sbr.rel (%p1148) target = $region36
        $region35: #{spatial_key_value.1} parent=31 // pred_region
          %s1151 = smul.u32 2, %s27
          %s1153 = ssub.s32 4096, 4096
          %1154 = vsyncadd %s1139, %s1153
          %s1155 = smul.addr %s26, 32
          %s1156 = sadd.s32 %s1151, %s1155
          %s1157 = smul.addr %s1156, 128
          %s1158 = scalar_lea.hbm %s3, %s1157
          %s1159 = sshll.u32 %s1142, 4
          %s1160 = int_to_ptr.vmem [resolvable:$true] %s1159
          %1165 = dma.vmem_to_hbm [thread:$0]  %s1160, 4096, %s1158, %s1139, 256, 256, 16
        $region36: #{spatial_key_value.1} parent=31 // pred_fallthru
          _
        // Predicated region
        $region37: #{spatial_key_value.1} parent=31 // pred_check
          %p1166 = pneg %p152
        $region38: #{spatial_key_value.1} parent=31 // pred_check_branch
          %1168 = sbr.rel (%p1166) target = $region40
        $region39: #{spatial_key_value.1} parent=31 // pred_region
          %s1169 = smul.u32 2, %s27
          %s1171 = ssub.s32 8192, 8192
          %1172 = vsyncadd %s1144, %s1171
          %s1173 = smul.addr %s26, 64
          %s1174 = sadd.s32 %s1169, %s1173
          %s1175 = smul.addr %s1174, 128
          %s1176 = scalar_lea.hbm %s4, %s1175
          %s1177 = sshll.u32 %s1147, 4
          %s1178 = int_to_ptr.vmem [resolvable:$true] %s1177
          %1183 = dma.vmem_to_hbm [thread:$0]  %s1178, 8192, %s1176, %s1144, 256, 256, 16
        $region40: #{spatial_key_value.1} parent=31 // pred_fallthru
          _
      $region32: #{spatial_key_value.1} parent=5 // pred_fallthru
        _
      %p1184 = scmp.le.s32.totalorder 2, %s17
      // Predicated region
      $region41: #{spatial_key_value.1} parent=5 // pred_check
        %p1185 = pneg %p1184
      $region42: #{spatial_key_value.1} parent=5 // pred_check_branch
        %1187 = sbr.rel (%p1185) target = $region44
      $region43: #{spatial_key_value.1} parent=5 // pred_region
        %s1188 = ssub.s32 %s17, 2
        // Predicated region
        $region45: #{spatial_key_value.1} parent=43 // pred_check
          %p1189 = pneg %p130
        $region46: #{spatial_key_value.1} parent=43 // pred_check_branch
          %1191 = sbr.rel (%p1189) target = $region48
        $region47: #{spatial_key_value.1} parent=43 // pred_region
          %s1192 = sand.u32 %s115, 1
          %s1193 = scalar_lea.sflag [#allocation3], %s1192
          %s1194 = sand.u32 %s115, 1
          %s1195 = smul.addr %s1194, 256
          %s1196 = scalar_lea.vmem [#allocation2], %s1195
          %1197 = dma.done %s1193, 4096
        $region48: #{spatial_key_value.1} parent=43 // pred_fallthru
          _
        // Predicated region
        $region49: #{spatial_key_value.1} parent=43 // pred_check
          %p1198 = pneg %p158
        $region50: #{spatial_key_value.1} parent=43 // pred_check_branch
          %1200 = sbr.rel (%p1198) target = $region52
        $region51: #{spatial_key_value.1} parent=43 // pred_region
          %s1201 = sand.u32 %s143, 1
          %s1202 = scalar_lea.sflag [#allocation5], %s1201
          %s1203 = sand.u32 %s143, 1
          %s1204 = smul.addr %s1203, 512
          %s1205 = scalar_lea.vmem [#allocation4], %s1204
          %1206 = dma.done %s1202, 8192
        $region52: #{spatial_key_value.1} parent=43 // pred_fallthru
          _
      $region44: #{spatial_key_value.1} parent=5 // pred_fallthru
        _
    $region6: #{spatial_key_value.1} parent=1 // loop_footer
      %s21 = sadd.s32 1, %s17
    $region7: #{spatial_key_value.1} parent=1 // loop_footer_branch
      %16 = sbr.rel target = $region3
    $region8: #{spatial_key_value.1} parent=1 // loop_exit
      _
    %1207 = vsyncpa [#allocation3], 1
    %s1208 = scalar_lea.sflag [#allocation3], 1
    %1209 = vsyncpa %s1208, 1
    %1210 = vsyncpa [#allocation5], 1
    %s1211 = scalar_lea.sflag [#allocation5], 1
    %1212 = vsyncpa %s1211, 1

</llo_original>
